<compile_context>
chip_gen: v7x
topology: tpu7x:2x2x1
jax: 0.10.0
libtpu: 0.0.40
codegen_flags: <defaults>
</compile_context>

<pallas_src>
import jax
import jax.numpy as jnp
from jax.experimental import pallas as pl
from jax.experimental.pallas import tpu as pltpu

# ----------------------------- configuration --------------------------------
B = 2                     # batch
C_IN = 1                  # input audio channels
ENC_SIZE = 32             # enc_size
AR_SIZE = 32              # ar_size
VISIBLE_STEPS = 8         # visible_steps
PREDICTION_STEPS = 4      # prediction_steps
KERNEL_SIZE = 16          # encoder receptive_field
STRIDE = 16               # encoder downsampling_factor
# item_length = receptive_field + (visible + prediction) * downsampling_factor
ITEM_LENGTH = KERNEL_SIZE + (VISIBLE_STEPS + PREDICTION_STEPS) * STRIDE  # 208

T_OUT = (ITEM_LENGTH - KERNEL_SIZE) // STRIDE + 1        # 13 encoder time steps
VIS_START = T_OUT - VISIBLE_STEPS - PREDICTION_STEPS     # 1 (first needed step)
N_STEPS = VISIBLE_STEPS + PREDICTION_STEPS               # 12 needed time steps
Z_ROWS = B * N_STEPS                                     # 24 (multiple of 8)
VK = VISIBLE_STEPS * KERNEL_SIZE                         # 128 (visible patch width)
PRED_OUT = ENC_SIZE * PREDICTION_STEPS                   # 128 (already lane-dense)
LANE = 128                                               # lane-dense output width
ROW_PAD = 8                                              # sublane-dense row count


# --------------------------- fused Pallas kernel ------------------------------
def _fused_cpc_kernel(pz_ref, pv_ref, we_ref, wf_ref, wall_ref,
                      z_ref, c_ref, pred_ref):
    """Three independent MXU matmuls: encoder z, AR code c, prediction.

    pz_ref   : [Z_ROWS, K]     im2col patches for time steps 1..12 (b-major)
    pv_ref   : [B, V*K]        visible-window patches (contiguous slice of x)
    we_ref   : [K, ENC]        encoder weight, transposed
    wf_ref   : [V*K, AR]       W_enc folded into W_ar
    wall_ref : [V*K, ENC*P]    W_fused folded into W_pred
    z_ref    : [Z_ROWS, 128]   lane-dense z slab (valid lanes :ENC)
    c_ref    : [8, 128]        lane-dense c slab (valid: [:B, :AR])
    pred_ref : [8, 128]        lane-dense prediction slab (valid: [:B, :])
    """
    # --- encoder Conv1d for all (batch, time) rows in ONE matmul -------------
    z_all = jnp.dot(pz_ref[...], we_ref[...],
                    preferred_element_type=jnp.float32)            # [24, ENC]
    z_ref[...] = jnp.concatenate(
        [z_all, jnp.zeros((Z_ROWS, LANE - ENC_SIZE), jnp.float32)], axis=-1)

    pv = pv_ref[...]                                               # [B, 128]

    # --- AR Conv1d over the visible window (W_enc folded in) -> c ------------
    c = jnp.dot(pv, wf_ref[...], preferred_element_type=jnp.float32)    # [B, AR]

    # --- prediction Linear (fully folded weight; independent of c) -----------
    pred = jnp.dot(pv, wall_ref[...], preferred_element_type=jnp.float32)  # [B, 128]

    # --- build fully padded slabs in registers -> unmasked full-width stores -
    c_lanes = jnp.concatenate(
        [c, jnp.zeros((B, LANE - AR_SIZE), jnp.float32)], axis=-1)       # [B, 128]
    c_ref[...] = jnp.concatenate(
        [c_lanes, jnp.zeros((ROW_PAD - B, LANE), jnp.float32)], axis=0)
    pred_ref[...] = jnp.concatenate(
        [pred, jnp.zeros((ROW_PAD - B, PRED_OUT), jnp.float32)], axis=0)


def _fused_call(patches_z, patches_vis, we_t, w_fused, w_all):
    vmem = pl.BlockSpec(memory_space=pltpu.MemorySpace.VMEM)
    return pl.pallas_call(
        _fused_cpc_kernel,
        out_shape=(
            jax.ShapeDtypeStruct((Z_ROWS, LANE), jnp.float32),      # z slab
            jax.ShapeDtypeStruct((ROW_PAD, LANE), jnp.float32),     # c slab
            jax.ShapeDtypeStruct((ROW_PAD, PRED_OUT), jnp.float32), # pred slab
        ),
        in_specs=[vmem, vmem, vmem, vmem, vmem],
        out_specs=(vmem, vmem, vmem),
    )(patches_z, patches_vis, we_t, w_fused, w_all)


# ------------------------------- parameters -----------------------------------
def init_params(key):
    k1, k2, k3 = jax.random.split(key, 3)
    w_enc = 0.10 * jax.random.normal(k1, (ENC_SIZE, C_IN, KERNEL_SIZE), jnp.float32)
    w_ar = 0.05 * jax.random.normal(k2, (AR_SIZE, ENC_SIZE, VISIBLE_STEPS), jnp.float32)
    w_pred = 0.05 * jax.random.normal(
        k3, (ENC_SIZE * PREDICTION_STEPS, AR_SIZE), jnp.float32)
    return w_enc, w_ar, w_pred


def prepare_weights(w_enc, w_ar, w_pred):
    """One-time weight layout prep + folding (hoisted out of the per-step jit).

    W_fused[(t,k), a] = sum_e W_enc[e,0,k] * W_ar[a,e,t]    (exact algebra)
    W_all             = W_fused @ W_pred.T
    """
    we2 = w_enc.reshape(ENC_SIZE, C_IN * KERNEL_SIZE)               # [ENC, K]
    we_t = we2.T                                                    # [K, ENC]
    w_fused = jnp.einsum('ek,aet->tka', we2, w_ar).reshape(VK, AR_SIZE)  # [128, 32]
    w_all = w_fused @ w_pred.T                                      # [128, 128]
    return we_t, w_fused, w_all


# ------------------------------- forward -------------------------------------
@jax.jit
def forward(x, we_t, w_fused, w_all):
    """Pallas implementation of AudioPredictiveCodingModel.forward."""
    assert x.shape == (B, C_IN, ITEM_LENGTH)

    # im2col: stride == kernel & C_IN == 1 -> contiguous slice + free reshapes.
    # Only time steps [VIS_START, T_OUT) are needed by the module's outputs.
    xs = x[:, 0, VIS_START * STRIDE:]                       # [B, N_STEPS*K] = [2,192]
    patches_z = xs.reshape(Z_ROWS, KERNEL_SIZE)             # [24, 16]  (b-major rows)
    patches_vis = xs[:, :VK]                                # [2, 128]  visible window

    # --- single fused kernel: encoder + AR conv + prediction Linear ----------
    z_slab, c_slab, pred_slab = _fused_call(patches_z, patches_vis,
                                            we_t, w_fused, w_all)

    # --- unpack padded, lane-dense slabs (cheap XLA slicing/reshapes) --------
    z_te = z_slab[:, :ENC_SIZE].reshape(B, N_STEPS, ENC_SIZE)          # [B, 12, ENC]
    z_out = jnp.transpose(z_te[:, :VISIBLE_STEPS, :], (0, 2, 1))       # [B, ENC, V]
    targets = jnp.transpose(z_te[:, VISIBLE_STEPS:, :], (0, 2, 1))     # [B, ENC, P]
    c = c_slab[:B, :AR_SIZE]                                           # [B, AR]
    predicted_z = pred_slab[:B, :PRED_OUT].reshape(
        -1, PREDICTION_STEPS, ENC_SIZE)                                # [B, P, ENC]
    return predicted_z, targets, z_out, c


# ------------------------- pure-JAX reference check --------------------------
def reference(x, w_enc, w_ar, w_pred):
    dn = ('NCH', 'OIH', 'NCH')
    z = jax.lax.conv_general_dilated(x, w_enc, (STRIDE,), 'VALID',
                                     dimension_numbers=dn)
    targets = z[:, :, -PREDICTION_STEPS:]
    zv = z[:, :, -(VISIBLE_STEPS + PREDICTION_STEPS):-PREDICTION_STEPS]
    c = jax.lax.conv_general_dilated(zv, w_ar, (1,), 'VALID',
                                     dimension_numbers=dn)[:, :, 0]
    pred = (c @ w_pred.T).reshape(-1, PREDICTION_STEPS, ENC_SIZE)
    return pred, targets, zv, c


# ---------------------------------- main --------------------------------------
if __name__ == "__main__":
    key = jax.random.PRNGKey(0)
    kx, kp = jax.random.split(key)
    x = jax.random.normal(kx, (B, C_IN, ITEM_LENGTH), jnp.float32)
    w_enc, w_ar, w_pred = init_params(kp)

    # One-time weight folding / layout prep (outside the per-step jit).
    we_t, w_fused, w_all = prepare_weights(w_enc, w_ar, w_pred)

    outs = forward(x, we_t, w_fused, w_all)
    outs = jax.block_until_ready(outs)

    refs = reference(x, w_enc, w_ar, w_pred)
    for o, r in zip(outs, refs):
        assert o.shape == r.shape, (o.shape, r.shape)
        assert jnp.allclose(o, r, atol=5e-4, rtol=5e-4)

    print("KERNEL_OK")
</pallas_src>

<mosaic_0001>
module attributes {stable_mosaic.version = 11 : i64} {
  func.func @_fused_cpc_kernel(%arg0: memref<24x16xf32, #tpu.memory_space<vmem>>, %arg1: memref<2x128xf32, #tpu.memory_space<vmem>>, %arg2: memref<16x32xf32, #tpu.memory_space<vmem>>, %arg3: memref<128x32xf32, #tpu.memory_space<vmem>>, %arg4: memref<128x128xf32, #tpu.memory_space<vmem>>, %arg5: memref<24x128xf32, #tpu.memory_space<vmem>>, %arg6: memref<8x128xf32, #tpu.memory_space<vmem>>, %arg7: memref<8x128xf32, #tpu.memory_space<vmem>>) attributes {dimension_semantics = [], scalar_prefetch = 0 : i64, scratch_operands = 0 : i64, tpu.core_type = #tpu.core_type<tc>} {
    %c0 = arith.constant 0 : index
    %c0_0 = arith.constant 0 : index
    %0 = vector.load %arg0[%c0, %c0_0] : memref<24x16xf32, #tpu.memory_space<vmem>>, vector<24x16xf32>
    %c0_1 = arith.constant 0 : index
    %c0_2 = arith.constant 0 : index
    %1 = vector.load %arg2[%c0_1, %c0_2] : memref<16x32xf32, #tpu.memory_space<vmem>>, vector<16x32xf32>
    %cst = arith.constant dense<0.000000e+00> : vector<24x32xf32>
    %2 = tpu.matmul %0, %1, %cst {dimension_numbers = #tpu.dot_dimension_numbers<[1], [0], [0], [1], [0, 0, 1, 1], [], []>} : vector<24x16xf32>, vector<16x32xf32>, vector<24x32xf32> -> vector<24x32xf32>
    %cst_3 = arith.constant 0.000000e+00 : f32
    %3 = vector.broadcast %cst_3 : f32 to vector<24x96xf32>
    %4 = tpu.concatenate %2, %3 in 1 : vector<24x32xf32>, vector<24x96xf32> -> vector<24x128xf32>
    %c0_4 = arith.constant 0 : index
    %c0_5 = arith.constant 0 : index
    %5 = vector.load %arg5[%c0_4, %c0_5] : memref<24x128xf32, #tpu.memory_space<vmem>>, vector<24x128xf32>
    tpu.vector_store %arg5[%c0_4, %c0_5], %4 {strides = array<i32>} : memref<24x128xf32, #tpu.memory_space<vmem>>, vector<24x128xf32>,
    %c0_6 = arith.constant 0 : index
    %c0_7 = arith.constant 0 : index
    %6 = vector.load %arg1[%c0_6, %c0_7] : memref<2x128xf32, #tpu.memory_space<vmem>>, vector<2x128xf32>
    %c0_8 = arith.constant 0 : index
    %c0_9 = arith.constant 0 : index
    %7 = vector.load %arg3[%c0_8, %c0_9] : memref<128x32xf32, #tpu.memory_space<vmem>>, vector<128x32xf32>
    %cst_10 = arith.constant dense<0.000000e+00> : vector<2x32xf32>
    %8 = tpu.matmul %6, %7, %cst_10 {dimension_numbers = #tpu.dot_dimension_numbers<[1], [0], [0], [1], [0, 0, 1, 1], [], []>} : vector<2x128xf32>, vector<128x32xf32>, vector<2x32xf32> -> vector<2x32xf32>
    %c0_11 = arith.constant 0 : index
    %c0_12 = arith.constant 0 : index
    %9 = vector.load %arg4[%c0_11, %c0_12] : memref<128x128xf32, #tpu.memory_space<vmem>>, vector<128x128xf32>
    %cst_13 = arith.constant dense<0.000000e+00> : vector<2x128xf32>
    %10 = tpu.matmul %6, %9, %cst_13 {dimension_numbers = #tpu.dot_dimension_numbers<[1], [0], [0], [1], [0, 0, 1, 1], [], []>} : vector<2x128xf32>, vector<128x128xf32>, vector<2x128xf32> -> vector<2x128xf32>
    %cst_14 = arith.constant 0.000000e+00 : f32
    %11 = vector.broadcast %cst_14 : f32 to vector<2x96xf32>
    %12 = tpu.concatenate %8, %11 in 1 : vector<2x32xf32>, vector<2x96xf32> -> vector<2x128xf32>
    %cst_15 = arith.constant 0.000000e+00 : f32
    %13 = vector.broadcast %cst_15 : f32 to vector<6x128xf32>
    %14 = tpu.concatenate %12, %13 in 0 : vector<2x128xf32>, vector<6x128xf32> -> vector<8x128xf32>
    %c0_16 = arith.constant 0 : index
    %c0_17 = arith.constant 0 : index
    %15 = vector.load %arg6[%c0_16, %c0_17] : memref<8x128xf32, #tpu.memory_space<vmem>>, vector<8x128xf32>
    tpu.vector_store %arg6[%c0_16, %c0_17], %14 {strides = array<i32>} : memref<8x128xf32, #tpu.memory_space<vmem>>, vector<8x128xf32>,
    %cst_18 = arith.constant 0.000000e+00 : f32
    %16 = vector.broadcast %cst_18 : f32 to vector<6x128xf32>
    %17 = tpu.concatenate %10, %16 in 0 : vector<2x128xf32>, vector<6x128xf32> -> vector<8x128xf32>
    %c0_19 = arith.constant 0 : index
    %c0_20 = arith.constant 0 : index
    %18 = vector.load %arg7[%c0_19, %c0_20] : memref<8x128xf32, #tpu.memory_space<vmem>>, vector<8x128xf32>
    tpu.vector_store %arg7[%c0_19, %c0_20], %17 {strides = array<i32>} : memref<8x128xf32, #tpu.memory_space<vmem>>, vector<8x128xf32>,
    return
  }
}

</mosaic_0001>

<llo_original>
// kernel: squeeze.3
$region0: #{squeeze.3}
  %s0 = inlined_call_operand.vmem [shape: f32[2,1,192], index: 0, kind: input, shape index: {}]
  %s1 = inlined_call_operand.vmem [shape: f32[24,16], index: 1, kind: output, shape index: {}]
  $region1: #{squeeze.3} parent=0
    #allocation0 [shape = 'u8[8192]{0}', space=vmem, size = 0x2000, scoped, tag = 'scoped mem for input reshape']
    %s3 = sshllo.u32 0, 2
    %s4 = scalar_lea.vmem %s0, 2
    %v5 = vld [vmem:[%s4] sm:%s3]
    %s6 = scalar_lea.vmem [#allocation0], 8
    %7 = vst [vmem:[%s6] sm:%s3] %v5
    %v8 = vld [vmem:[%s0] sm:%s3]
    %9 = vst [vmem:[#allocation0] sm:%s3] %v8
    %v10 = vld [vmem:[#allocation0] sm:$0x3]
    %vm11 = vcmask 130048
    %12 = vst.msk [vmem:[%s1] ss:$12 sm:$0x3] %vm11, %v10
    %s13 = scalar_lea.vmem [#allocation0], 8
    %v14 = vld [vmem:[%s13] sm:$0x3]
    %vm15 = vcmask 130048
    %s16 = scalar_lea.vmem %s1, 8
    %17 = vst.msk [vmem:[%s16] ss:$12 sm:$0x3] %vm15, %v14
    %v18 = vld.sshfl [vmem:[#allocation0] sm:$0xff pattern:$0x99999180]
    %19 = vrot.lane.b32.xlu0 %v18, 112
    %v20 = vpop.permute.xlu0 %19
    %vm21 = vcmask 130048
    %s22 = scalar_lea.vmem %s1, 1
    %23 = vst.msk [vmem:[%s22] ss:$8 sm:$0x3] %vm21, %v20
    %s24 = scalar_lea.vmem %s1, 4294967293
    %25 = vst.msk [vmem:[%s24] ss:$8 sm:$0xc] %vm21, %v20
    %v26 = vld.sshfl [vmem:[#allocation0] sm:$0xff pattern:$0x99999180]
    %27 = vrot.lane.b32.xlu0 %v26, 96
    %v28 = vpop.permute.xlu0 %27
    %vm29 = vcmask 130048
    %s30 = scalar_lea.vmem %s1, 2
    %31 = vst.msk [vmem:[%s30] ss:$8 sm:$0x3] %vm29, %v28
    %s32 = scalar_lea.vmem %s1, 4294967294
    %33 = vst.msk [vmem:[%s32] ss:$8 sm:$0xc] %vm29, %v28
    %v34 = vld.sshfl [vmem:[#allocation0] sm:$0xff pattern:$0x99999180]
    %35 = vrot.lane.b32.xlu0 %v34, 80
    %v36 = vpop.permute.xlu0 %35
    %vm37 = vcmask 130048
    %s38 = scalar_lea.vmem %s1, 3
    %39 = vst.msk [vmem:[%s38] ss:$8 sm:$0x3] %vm37, %v36
    %s40 = scalar_lea.vmem %s1, 4294967295
    %41 = vst.msk [vmem:[%s40] ss:$8 sm:$0xc] %vm37, %v36
    %v42 = vld [vmem:[#allocation0] sm:$0x3]
    %43 = vrot.lane.b32.xlu0 %v42, 64
    %v44 = vpop.permute.xlu0 %43
    %vm45 = vcmask 130048
    %s46 = scalar_lea.vmem %s1, 4
    %47 = vst.msk [vmem:[%s46] ss:$12 sm:$0x3] %vm45, %v44
    %v48 = vld [vmem:[#allocation0] sm:$0x3]
    %49 = vrot.lane.b32.xlu0 %v48, 48
    %v50 = vpop.permute.xlu0 %49
    %vm51 = vcmask 130048
    %s52 = scalar_lea.vmem %s1, 5
    %53 = vst.msk [vmem:[%s52] ss:$12 sm:$0x3] %vm51, %v50
    %v54 = vld [vmem:[#allocation0] sm:$0x3]
    %55 = vrot.lane.b32.xlu0 %v54, 32
    %v56 = vpop.permute.xlu0 %55
    %vm57 = vcmask 130048
    %s58 = scalar_lea.vmem %s1, 6
    %59 = vst.msk [vmem:[%s58] ss:$12 sm:$0x3] %vm57, %v56
    %v60 = vld [vmem:[#allocation0] sm:$0x3]
    %61 = vrot.lane.b32.xlu0 %v60, 16
    %v62 = vpop.permute.xlu0 %61
    %vm63 = vcmask 130048
    %s64 = scalar_lea.vmem %s1, 7
    %65 = vst.msk [vmem:[%s64] ss:$12 sm:$0x3] %vm63, %v62

// kernel: forward.1
$region0: #{forward.1}
  #allocation0 [shape = 'u32[]', space=smem, size = 0x4, offset = 0x4, fixed_abs, tag = 'smem constant byte address 0x4 - core index']
  #allocation1 [shape = 'u32[144,128]{1,0:T(1,128)}', space=vmem, size = 0x12000, scoped, tag = 'internal scratch']
  %s0 = inlined_call_operand.vmem [shape: f32[24,16], index: 0, kind: input, shape index: {}]
  %s1 = inlined_call_operand.vmem [shape: f32[2,128], index: 1, kind: input, shape index: {}]
  %s2 = inlined_call_operand.vmem [shape: f32[16,32], index: 2, kind: input, shape index: {}]
  %s3 = inlined_call_operand.vmem [shape: f32[128,32], index: 3, kind: input, shape index: {}]
  %s4 = inlined_call_operand.vmem [shape: f32[128,128], index: 4, kind: input, shape index: {}]
  %s5 = inlined_call_operand.vmem [shape: f32[24,128], index: 5, kind: output, shape index: {0}]
  %s6 = inlined_call_operand.vmem [shape: f32[8,128], index: 6, kind: output, shape index: {1}]
  %s7 = inlined_call_operand.vmem [shape: f32[8,128], index: 7, kind: output, shape index: {2}]
  %8 = xla_tuple %s5, %s6, %s7
  %s9 = sld [smem:[#allocation0]]
  $region46: #{forward.1} parent=0
    _
  %s11 = ssub.s32 1, %s9
  %s12 = scalar_select 0, %s11, %s9
  // Predicated region
  $region2: #{forward.1} parent=0 // pred_check
    _
  $region3: #{forward.1} parent=0 // pred_check_branch
    %14 = sbr.rel (0) target = $region5
  $region4: #{forward.1} parent=0 // pred_region
    _
  $region5: #{forward.1} parent=0 // pred_fallthru
    _
  // Predicated region
  $region6: #{forward.1} parent=0 // pred_check
    _
  $region7: #{forward.1} parent=0 // pred_check_branch
    %16 = sbr.rel (0) target = $region9
  $region8: #{forward.1} parent=0 // pred_region
    _
  $region9: #{forward.1} parent=0 // pred_fallthru
    _
  // Predicated region
  $region10: #{forward.1} parent=0 // pred_check
    _
  $region11: #{forward.1} parent=0 // pred_check_branch
    %18 = sbr.rel (0) target = $region13
  $region12: #{forward.1} parent=0 // pred_region
    _
  $region13: #{forward.1} parent=0 // pred_fallthru
    _
  // Predicated region
  $region14: #{forward.1} parent=0 // pred_check
    _
  $region15: #{forward.1} parent=0 // pred_check_branch
    %20 = sbr.rel (0) target = $region17
  $region16: #{forward.1} parent=0 // pred_region
    _
  $region17: #{forward.1} parent=0 // pred_fallthru
    _
  // Predicated region
  $region18: #{forward.1} parent=0 // pred_check
    _
  $region19: #{forward.1} parent=0 // pred_check_branch
    %22 = sbr.rel (0) target = $region21
  $region20: #{forward.1} parent=0 // pred_region
    _
  $region21: #{forward.1} parent=0 // pred_fallthru
    _
  %v23 = vld [vmem:[%s0] sm:$0xff]
  %v24 = vld [vmem:[%s0 + $0x8] sm:$0xff]
  %v25 = vld [vmem:[%s0 + $0x10] sm:$0xff]
  %v26 = vld [vmem:[%s2] sm:$0xff]
  %v27 = vld [vmem:[%s2 + $0x8] sm:$0xff]
  %vm28 = vcmask 130048
  %v30 = vsel %vm28, %v23, 0
  %v33 = vsel %vm28, %v24, 0
  %v36 = vsel %vm28, %v25, 0
  %38 = vmatprep.subr.mxu0 0.0
  %39 = vmatpush1.msra.mxu0 %v26
  %40 = vmatprep.subr.mxu0 0.0
  %41 = vmatpush1.msra.mxu0 %v27
  %42 = vmatprep.subr.mxu0 0.0
  %43 = vmatpush1.msra.mxu0 0.0
  %44 = vmatprep.subr.mxu0 0.0
  %45 = vmatpush1.msra.mxu0 0.0
  %46 = vmatprep.subr.mxu0 0.0
  %47 = vmatpush1.msra.mxu0 0.0
  %48 = vmatprep.subr.mxu0 0.0
  %49 = vmatpush1.msra.mxu0 0.0
  %50 = vmatprep.subr.mxu0 0.0
  %51 = vmatpush1.msra.mxu0 0.0
  %52 = vmatprep.subr.mxu0 0.0
  %53 = vmatpush1.msra.mxu0 0.0
  %54 = vmatprep.subr.mxu0 0.0
  %55 = vmatpush1.msra.mxu0 0.0
  %56 = vmatprep.subr.mxu0 0.0
  %57 = vmatpush1.msra.mxu0 0.0
  %58 = vmatprep.subr.mxu0 0.0
  %59 = vmatpush1.msra.mxu0 0.0
  %60 = vmatprep.subr.mxu0 0.0
  %61 = vmatpush1.msra.mxu0 0.0
  %62 = vmatprep.subr.mxu0 0.0
  %63 = vmatpush1.msra.mxu0 0.0
  %64 = vmatprep.subr.mxu0 0.0
  %65 = vmatpush1.msra.mxu0 0.0
  %66 = vmatprep.subr.mxu0 0.0
  %67 = vmatpush1.msra.mxu0 0.0
  %68 = vmatprep.subr.mxu0 0.0
  %69 = vmatpush1.msra.mxu0 0.0
  %70 = vmatprep.subr.mxu0 0.0
  %71 = vmatpush1.msra.mxu0 0.0
  %72 = vmatprep.subr.mxu0 0.0
  %73 = vmatpush1.msra.mxu0 0.0
  %74 = vmatprep.subr.mxu0 0.0
  %75 = vmatpush1.msra.mxu0 0.0
  %76 = vmatprep.subr.mxu0 0.0
  %77 = vmatpush1.msra.mxu0 0.0
  %78 = vmatprep.subr.mxu0 0.0
  %79 = vmatpush1.msra.mxu0 0.0
  %80 = vmatprep.subr.mxu0 0.0
  %81 = vmatpush1.msra.mxu0 0.0
  %82 = vmatprep.subr.mxu0 0.0
  %83 = vmatpush1.msra.mxu0 0.0
  %84 = vmatprep.subr.mxu0 0.0
  %85 = vmatpush1.msra.mxu0 0.0
  %86 = vmatprep.subr.mxu0 0.0
  %87 = vmatpush1.msra.mxu0 0.0
  %88 = vmatprep.subr.mxu0 0.0
  %89 = vmatpush1.msra.mxu0 0.0
  %90 = vmatprep.subr.mxu0 0.0
  %91 = vmatpush1.msra.mxu0 0.0
  %92 = vmatprep.subr.mxu0 0.0
  %93 = vmatpush1.msra.mxu0 0.0
  %94 = vmatprep.subr.mxu0 0.0
  %95 = vmatpush1.msra.mxu0 0.0
  %96 = vmatprep.subr.mxu0 0.0
  %97 = vmatpush1.msra.mxu0 0.0
  %98 = vmatprep.subr.mxu0 0.0
  %99 = vmatpush1.msra.mxu0 0.0
  %100 = vmatprep.subr.mxu0 0.0
  %101 = vmatpush1.msra.mxu0 0.0
  %102 = vmatprep.mubr.f32.mxu0 0.0
  %103 = vmatmul.mubr.f32.gmra.mrb[0].mxu0 %v30
  %v104 = vpop.f32.mrb[0].mxu0
  %v105 = vadd.f32 0.0, %v104
  %v106 = vpop.f32.mrb[0].mxu0
  %107 = vmatprep.mubr.f32.mxu0 0.0
  %108 = vmatmul.mubr.f32.gmra.mrb[0].mxu0 %v33
  %v109 = vpop.f32.mrb[0].mxu0
  %v110 = vadd.f32 0.0, %v109
  %v111 = vpop.f32.mrb[0].mxu0
  %112 = vmatprep.mubr.f32.mxu0 0.0
  %113 = vmatmul.mubr.f32.gmra.mrb[0].mxu0 %v36
  %v114 = vpop.f32.mrb[0].mxu0
  %v115 = vadd.f32 0.0, %v114
  %v116 = vpop.f32.mrb[0].mxu0
  %117 = vdwg.mxu0
  %vm118 = vcmask 261120
  %v119 = vsel %vm118, %v105, 0.0
  %v120 = vsel %vm118, %v110, 0.0
  %v121 = vsel %vm118, %v115, 0.0
  %122 = vst [vmem:[%s5] sm:$0xff] %v119
  %123 = vst [vmem:[%s5 + $0x8] sm:$0xff] %v120
  %124 = vst [vmem:[%s5 + $0x10] sm:$0xff] %v121
  %v125 = vld [vmem:[%s1] sm:$0x3]
  %v126 = vld [vmem:[%s3] sm:$0xff]
  %v127 = vld [vmem:[%s3 + $0x8] sm:$0xff]
  %v128 = vld [vmem:[%s3 + $0x10] sm:$0xff]
  %v129 = vld [vmem:[%s3 + $0x18] sm:$0xff]
  %v130 = vld [vmem:[%s3 + $0x20] sm:$0xff]
  %v131 = vld [vmem:[%s3 + $0x28] sm:$0xff]
  %v132 = vld [vmem:[%s3 + $0x30] sm:$0xff]
  %v133 = vld [vmem:[%s3 + $0x38] sm:$0xff]
  %v134 = vld [vmem:[%s3 + $0x40] sm:$0xff]
  %v135 = vld [vmem:[%s3 + $0x48] sm:$0xff]
  %v136 = vld [vmem:[%s3 + $0x50] sm:$0xff]
  %v137 = vld [vmem:[%s3 + $0x58] sm:$0xff]
  %v138 = vld [vmem:[%s3 + $0x60] sm:$0xff]
  %v139 = vld [vmem:[%s3 + $0x68] sm:$0xff]
  %v140 = vld [vmem:[%s3 + $0x70] sm:$0xff]
  %v141 = vld [vmem:[%s3 + $0x78] sm:$0xff]
  %142 = vmatprep.subr.mxu0 0.0
  %143 = vmatpush1.msra.mxu0 %v126
  %144 = vmatprep.subr.mxu0 0.0
  %145 = vmatpush1.msra.mxu0 %v127
  %146 = vmatprep.subr.mxu0 0.0
  %147 = vmatpush1.msra.mxu0 %v128
  %148 = vmatprep.subr.mxu0 0.0
  %149 = vmatpush1.msra.mxu0 %v129
  %150 = vmatprep.subr.mxu0 0.0
  %151 = vmatpush1.msra.mxu0 %v130
  %152 = vmatprep.subr.mxu0 0.0
  %153 = vmatpush1.msra.mxu0 %v131
  %154 = vmatprep.subr.mxu0 0.0
  %155 = vmatpush1.msra.mxu0 %v132
  %156 = vmatprep.subr.mxu0 0.0
  %157 = vmatpush1.msra.mxu0 %v133
  %158 = vmatprep.subr.mxu0 0.0
  %159 = vmatpush1.msra.mxu0 %v134
  %160 = vmatprep.subr.mxu0 0.0
  %161 = vmatpush1.msra.mxu0 %v135
  %162 = vmatprep.subr.mxu0 0.0
  %163 = vmatpush1.msra.mxu0 %v136
  %164 = vmatprep.subr.mxu0 0.0
  %165 = vmatpush1.msra.mxu0 %v137
  %166 = vmatprep.subr.mxu0 0.0
  %167 = vmatpush1.msra.mxu0 %v138
  %168 = vmatprep.subr.mxu0 0.0
  %169 = vmatpush1.msra.mxu0 %v139
  %170 = vmatprep.subr.mxu0 0.0
  %171 = vmatpush1.msra.mxu0 %v140
  %172 = vmatprep.subr.mxu0 0.0
  %173 = vmatpush1.msra.mxu0 %v141
  %174 = vmatprep.subr.mxu0 0.0
  %175 = vmatpush1.msra.mxu0 0.0
  %176 = vmatprep.subr.mxu0 0.0
  %177 = vmatpush1.msra.mxu0 0.0
  %178 = vmatprep.subr.mxu0 0.0
  %179 = vmatpush1.msra.mxu0 0.0
  %180 = vmatprep.subr.mxu0 0.0
  %181 = vmatpush1.msra.mxu0 0.0
  %182 = vmatprep.subr.mxu0 0.0
  %183 = vmatpush1.msra.mxu0 0.0
  %184 = vmatprep.subr.mxu0 0.0
  %185 = vmatpush1.msra.mxu0 0.0
  %186 = vmatprep.subr.mxu0 0.0
  %187 = vmatpush1.msra.mxu0 0.0
  %188 = vmatprep.subr.mxu0 0.0
  %189 = vmatpush1.msra.mxu0 0.0
  %190 = vmatprep.subr.mxu0 0.0
  %191 = vmatpush1.msra.mxu0 0.0
  %192 = vmatprep.subr.mxu0 0.0
  %193 = vmatpush1.msra.mxu0 0.0
  %194 = vmatprep.subr.mxu0 0.0
  %195 = vmatpush1.msra.mxu0 0.0
  %196 = vmatprep.subr.mxu0 0.0
  %197 = vmatpush1.msra.mxu0 0.0
  %198 = vmatprep.subr.mxu0 0.0
  %199 = vmatpush1.msra.mxu0 0.0
  %200 = vmatprep.subr.mxu0 0.0
  %201 = vmatpush1.msra.mxu0 0.0
  %202 = vmatprep.subr.mxu0 0.0
  %203 = vmatpush1.msra.mxu0 0.0
  %204 = vmatprep.subr.mxu0 0.0
  %205 = vmatpush1.msra.mxu0 0.0
  %206 = vmatprep.mubr.f32.mxu0 0.0
  %207 = vmatmul.mubr.f32.gmra.mrb[0].mxu0 %v125
  %v208 = vpop.f32.mrb[0].mxu0
  %v209 = vadd.f32 0.0, %v208
  %v210 = vpop.f32.mrb[0].mxu0
  %211 = vdwg.mxu0
  %v212 = vld [vmem:[%s4] sm:$0xff]
  %v213 = vld [vmem:[%s4 + $0x8] sm:$0xff]
  %v214 = vld [vmem:[%s4 + $0x10] sm:$0xff]
  %v215 = vld [vmem:[%s4 + $0x18] sm:$0xff]
  %v216 = vld [vmem:[%s4 + $0x20] sm:$0xff]
  %v217 = vld [vmem:[%s4 + $0x28] sm:$0xff]
  %v218 = vld [vmem:[%s4 + $0x30] sm:$0xff]
  %v219 = vld [vmem:[%s4 + $0x38] sm:$0xff]
  %v220 = vld [vmem:[%s4 + $0x40] sm:$0xff]
  %v221 = vld [vmem:[%s4 + $0x48] sm:$0xff]
  %v222 = vld [vmem:[%s4 + $0x50] sm:$0xff]
  %v223 = vld [vmem:[%s4 + $0x58] sm:$0xff]
  %v224 = vld [vmem:[%s4 + $0x60] sm:$0xff]
  %v225 = vld [vmem:[%s4 + $0x68] sm:$0xff]
  %v226 = vld [vmem:[%s4 + $0x70] sm:$0xff]
  %v227 = vld [vmem:[%s4 + $0x78] sm:$0xff]
  %228 = vmatprep.subr.mxu0 0.0
  %229 = vmatpush1.msra.mxu0 %v212
  %230 = vmatprep.subr.mxu0 0.0
  %231 = vmatpush1.msra.mxu0 %v213
  %232 = vmatprep.subr.mxu0 0.0
  %233 = vmatpush1.msra.mxu0 %v214
  %234 = vmatprep.subr.mxu0 0.0
  %235 = vmatpush1.msra.mxu0 %v215
  %236 = vmatprep.subr.mxu0 0.0
  %237 = vmatpush1.msra.mxu0 %v216
  %238 = vmatprep.subr.mxu0 0.0
  %239 = vmatpush1.msra.mxu0 %v217
  %240 = vmatprep.subr.mxu0 0.0
  %241 = vmatpush1.msra.mxu0 %v218
  %242 = vmatprep.subr.mxu0 0.0
  %243 = vmatpush1.msra.mxu0 %v219
  %244 = vmatprep.subr.mxu0 0.0
  %245 = vmatpush1.msra.mxu0 %v220
  %246 = vmatprep.subr.mxu0 0.0
  %247 = vmatpush1.msra.mxu0 %v221
  %248 = vmatprep.subr.mxu0 0.0
  %249 = vmatpush1.msra.mxu0 %v222
  %250 = vmatprep.subr.mxu0 0.0
  %251 = vmatpush1.msra.mxu0 %v223
  %252 = vmatprep.subr.mxu0 0.0
  %253 = vmatpush1.msra.mxu0 %v224
  %254 = vmatprep.subr.mxu0 0.0
  %255 = vmatpush1.msra.mxu0 %v225
  %256 = vmatprep.subr.mxu0 0.0
  %257 = vmatpush1.msra.mxu0 %v226
  %258 = vmatprep.subr.mxu0 0.0
  %259 = vmatpush1.msra.mxu0 %v227
  %260 = vmatprep.subr.mxu0 0.0
  %261 = vmatpush1.msra.mxu0 0.0
  %262 = vmatprep.subr.mxu0 0.0
  %263 = vmatpush1.msra.mxu0 0.0
  %264 = vmatprep.subr.mxu0 0.0
  %265 = vmatpush1.msra.mxu0 0.0
  %266 = vmatprep.subr.mxu0 0.0
  %267 = vmatpush1.msra.mxu0 0.0
  %268 = vmatprep.subr.mxu0 0.0
  %269 = vmatpush1.msra.mxu0 0.0
  %270 = vmatprep.subr.mxu0 0.0
  %271 = vmatpush1.msra.mxu0 0.0
  %272 = vmatprep.subr.mxu0 0.0
  %273 = vmatpush1.msra.mxu0 0.0
  %274 = vmatprep.subr.mxu0 0.0
  %275 = vmatpush1.msra.mxu0 0.0
  %276 = vmatprep.subr.mxu0 0.0
  %277 = vmatpush1.msra.mxu0 0.0
  %278 = vmatprep.subr.mxu0 0.0
  %279 = vmatpush1.msra.mxu0 0.0
  %280 = vmatprep.subr.mxu0 0.0
  %281 = vmatpush1.msra.mxu0 0.0
  %282 = vmatprep.subr.mxu0 0.0
  %283 = vmatpush1.msra.mxu0 0.0
  %284 = vmatprep.subr.mxu0 0.0
  %285 = vmatpush1.msra.mxu0 0.0
  %286 = vmatprep.subr.mxu0 0.0
  %287 = vmatpush1.msra.mxu0 0.0
  %288 = vmatprep.subr.mxu0 0.0
  %289 = vmatpush1.msra.mxu0 0.0
  %290 = vmatprep.subr.mxu0 0.0
  %291 = vmatpush1.msra.mxu0 0.0
  %292 = vmatprep.mubr.f32.mxu0 0.0
  %293 = vmatmul.mubr.f32.gmra.mrb[0].mxu0 %v125
  %v294 = vpop.f32.mrb[0].mxu0
  %v295 = vadd.f32 0.0, %v294
  %v296 = vpop.f32.mrb[0].mxu0
  %297 = vdwg.mxu0
  %v298 = vsel %vm118, %v209, 0.0
  %vm299 = vcmask 1041408
  %v300 = vsel %vm299, %v298, 0.0
  %301 = vst [vmem:[%s6] sm:$0xff] %v300
  %v302 = vsel %vm299, %v295, 0.0
  %303 = vst [vmem:[%s7] sm:$0xff] %v302
  // Predicated region
  $region22: #{forward.1} parent=0 // pred_check
    _
  $region23: #{forward.1} parent=0 // pred_check_branch
    %305 = sbr.rel (0) target = $region25
  $region24: #{forward.1} parent=0 // pred_region
    _
  $region25: #{forward.1} parent=0 // pred_fallthru
    _
  // Predicated region
  $region26: #{forward.1} parent=0 // pred_check
    _
  $region27: #{forward.1} parent=0 // pred_check_branch
    %307 = sbr.rel (0) target = $region29
  $region28: #{forward.1} parent=0 // pred_region
    _
  $region29: #{forward.1} parent=0 // pred_fallthru
    _
  // Predicated region
  $region30: #{forward.1} parent=0 // pred_check
    _
  $region31: #{forward.1} parent=0 // pred_check_branch
    %309 = sbr.rel (0) target = $region33
  $region32: #{forward.1} parent=0 // pred_region
    _
  $region33: #{forward.1} parent=0 // pred_fallthru
    _
  // Predicated region
  $region34: #{forward.1} parent=0 // pred_check
    _
  $region35: #{forward.1} parent=0 // pred_check_branch
    %311 = sbr.rel (0) target = $region37
  $region36: #{forward.1} parent=0 // pred_region
    _
  $region37: #{forward.1} parent=0 // pred_fallthru
    _
  // Predicated region
  $region38: #{forward.1} parent=0 // pred_check
    _
  $region39: #{forward.1} parent=0 // pred_check_branch
    %313 = sbr.rel (0) target = $region41
  $region40: #{forward.1} parent=0 // pred_region
    _
  $region41: #{forward.1} parent=0 // pred_fallthru
    _
  // Predicated region
  $region42: #{forward.1} parent=0 // pred_check
    _
  $region43: #{forward.1} parent=0 // pred_check_branch
    %315 = sbr.rel (0) target = $region45
  $region44: #{forward.1} parent=0 // pred_region
    _
  $region45: #{forward.1} parent=0 // pred_fallthru
    _

</llo_original>
